<compile_context>
chip_gen: v6e
topology: v6e:2x2x1
jax: 0.10.0
libtpu: 0.0.40
codegen_flags: <defaults>
</compile_context>

<pallas_src>
import functools

import numpy as np
import jax
import jax.numpy as jnp
from jax.experimental import pallas as pl
from jax.experimental.pallas import tpu as pltpu


# ------------------------------ helpers -------------------------------------

def _round_up(x, m):
    return (x + m - 1) // m * m


def _cdiv(a, b):
    return -(-a // b)


@functools.lru_cache(maxsize=None)
def _fold_constants(features, components):
    """Constant placement matrix M (out_dim, OUT_PAD) and the diagonal mask.

    M folds split + unflatten + diag_embed placement + masked_scatter (row-major
    strictly-lower order, matching torch.masked_scatter) into the third MLP
    matmul. Diagonal entries are placed RAW; exp(.)+1e-5 is applied in-kernel.
    Packed layout: [logits (K) | loc (K*F) | scale flat (K*F*F) | zero pad].
    """
    K, F = components, features
    T = F * (F - 1) // 2
    sizes = [K, K * F, K * F, K * T]
    o = np.cumsum([0] + sizes)
    out_dim = int(o[-1])
    scale_off = K + K * F
    out_pad = _round_up(scale_off + K * F * F, 128)

    M = np.zeros((out_dim, out_pad), np.float32)
    # logits
    for k in range(K):
        M[o[0] + k, k] = 1.0
    # loc
    for m in range(K * F):
        M[o[1] + m, K + m] = 1.0
    # diag -> diagonal positions of each component's FxF block (raw value)
    for k in range(K):
        for f in range(F):
            M[o[2] + k * F + f, scale_off + k * F * F + f * F + f] = 1.0
    # tril -> strictly-lower positions, row-major (masked_scatter order)
    # TODO(synk): row-major np.tril_indices order assumed to match
    # torch.masked_scatter's fill order of zuko's tril vector; verify once
    # against PyTorch zuko.GMM.
    rows, cols = np.tril_indices(F, -1)
    for k in range(K):
        for t in range(T):
            M[o[3] + k * T + t, scale_off + k * F * F + rows[t] * F + cols[t]] = 1.0

    diag_mask = np.zeros((1, out_pad), np.float32)
    for k in range(K):
        for f in range(F):
            diag_mask[0, scale_off + k * F * F + f * F + f] = 1.0

    return M, diag_mask, scale_off, out_pad


def _vmem_capacity_bytes():
    try:
        return int(pltpu.get_tpu_info().vmem_capacity_bytes)
    except Exception:
        return 64 * 1024 * 1024          # conservative: v7x per-TensorCore VMEM


def _pick_tiling(B, context, hidden_pad, out_pad):
    """Choose (TB, n_tiles, B_pad, vmem_limit_bytes) from shapes + VMEM size."""
    budget = int(_vmem_capacity_bytes() * 3 // 4)    # ~48 MiB v7x, ~96 MiB v5e/v6e
    weights_bytes = 4 * (context * hidden_pad + hidden_pad       # w1, b1 (1 buffer)
                         + hidden_pad * hidden_pad + hidden_pad  # w2, b2
                         + hidden_pad * out_pad + out_pad        # w3f, b3f
                         + out_pad)                              # diag mask
    # per batch-row VMEM: double-buffered y + out tiles, plus f32 intermediates
    per_row = 4 * (2 * context + 2 * out_pad + 2 * hidden_pad)
    slack = 2 * 1024 * 1024
    tb_cap = (budget - weights_bytes - slack) // per_row
    tb_cap = max(8, min(2048, (tb_cap // 8) * 8))

    # Avoid padding B up to a TB multiple: pick the tile count first so that
    # B_pad / B ~ 1, then the (8-aligned) tile size.
    n_tiles = max(1, _cdiv(B, tb_cap))
    if n_tiles == 1 and B >= 256:
        n_tiles = 2          # grid >= 2 so "parallel" shards both v7x TensorCores
    TB = min(tb_cap, _round_up(_cdiv(B, n_tiles), 8))
    B_pad = n_tiles * TB
    return TB, n_tiles, B_pad, budget


def _resident_spec(shape):
    """BlockSpec for grid-invariant (weight/bias/mask) inputs: single buffer."""
    try:
        return pl.BlockSpec(shape, lambda i: (0, 0), pipeline_mode=pl.Buffered(1))
    except Exception:        # older jax without pipeline_mode / Buffered
        return pl.BlockSpec(shape, lambda i: (0, 0))


# ----------------------------- Pallas kernel --------------------------------

def _gmm_fused_kernel(y_ref, w1_ref, b1_ref, w2_ref, b2_ref, w3_ref, b3_ref,
                      mask_ref, out_ref):
    """Hyper-MLP + GMM parameter assembly, fully fused.

    out[b, :] = packed [logits | loc | scale_tril.flat | pad] for TB batch rows.
    The scatter of diag/tril into scale_tril is pre-folded into w3/b3; here we
    only run the MLP and apply exp(.)+1e-5 at diagonal positions (float mask).
    """
    mm_dt = w1_ref.dtype            # f32, or bf16 when use_bf16=True
    h = jnp.dot(y_ref[...], w1_ref[...],
                preferred_element_type=jnp.float32) + b1_ref[...]
    h = jnp.maximum(h, 0.0)
    h = jnp.dot(h.astype(mm_dt), w2_ref[...],
                preferred_element_type=jnp.float32) + b2_ref[...]
    h = jnp.maximum(h, 0.0)
    out = jnp.dot(h.astype(mm_dt), w3_ref[...],
                  preferred_element_type=jnp.float32) + b3_ref[...]
    is_diag = mask_ref[...] != 0.0                  # (1, OUT_PAD) broadcast
    out_ref[...] = jnp.where(is_diag, jnp.exp(out) + 1e-5, out)


# ------------------------------ JAX wrapper ----------------------------------

@functools.partial(jax.jit, static_argnames=("features", "components", "use_bf16"))
def gmm_forward(y, params, features, components, use_bf16=False):
    """Returns (logits, loc, scale_tril) — the parameters of
    Mixture(MultivariateNormal(loc, scale_tril), logits)."""
    B, context = y.shape
    K, F = components, features
    H = params["w1"].shape[1]
    H_pad = _round_up(H, 128)       # lane-dense intermediates / full MXU columns
    dh = H_pad - H

    M_np, mask_np, scale_off, out_pad = _fold_constants(F, K)
    M = jnp.asarray(M_np)
    diag_mask = jnp.asarray(mask_np)

    # Fold split/unflatten/diag_embed/masked_scatter into the last layer, then
    # zero-pad the hidden dim (padded rows/cols contribute nothing: relu(0)=0).
    w3f = jnp.dot(params["w3"], M)          # (H, OUT_PAD)
    b3f = jnp.dot(params["b3"], M)          # (1, OUT_PAD)
    w1, b1, w2, b2 = params["w1"], params["b1"], params["w2"], params["b2"]
    if dh:
        w1 = jnp.pad(w1, ((0, 0), (0, dh)))
        b1 = jnp.pad(b1, ((0, 0), (0, dh)))
        w2 = jnp.pad(w2, ((0, dh), (0, dh)))
        b2 = jnp.pad(b2, ((0, 0), (0, dh)))
        w3f = jnp.pad(w3f, ((0, dh), (0, 0)))

    mm_dtype = jnp.bfloat16 if use_bf16 else jnp.float32
    y_mm = y.astype(mm_dtype)
    w1 = w1.astype(mm_dtype)
    w2 = w2.astype(mm_dtype)
    w3f = w3f.astype(mm_dtype)
    b1 = b1.astype(jnp.float32)
    b2 = b2.astype(jnp.float32)
    b3f = b3f.astype(jnp.float32)

    # Batch tiling derived from shapes + VMEM capacity (v7x-safe).
    TB, n_tiles, B_pad, vmem_limit = _pick_tiling(B, context, H_pad, out_pad)
    if B_pad != B:
        y_mm = jnp.pad(y_mm, ((0, B_pad - B), (0, 0)))

    out = pl.pallas_call(
        _gmm_fused_kernel,
        out_shape=jax.ShapeDtypeStruct((B_pad, out_pad), jnp.float32),
        grid=(n_tiles,),
        in_specs=[
            pl.BlockSpec((TB, context), lambda i: (i, 0)),   # y (tiled over batch)
            _resident_spec((context, H_pad)),                # w1 (VMEM resident)
            _resident_spec((1, H_pad)),                      # b1
            _resident_spec((H_pad, H_pad)),                  # w2
            _resident_spec((1, H_pad)),                      # b2
            _resident_spec((H_pad, out_pad)),                # w3 (folded)
            _resident_spec((1, out_pad)),                    # b3 (folded)
            _resident_spec((1, out_pad)),                    # diag mask
        ],
        out_specs=pl.BlockSpec((TB, out_pad), lambda i: (i, 0)),   # lane-dense slab
        compiler_params=pltpu.CompilerParams(
            dimension_semantics=("parallel",),       # megacore sharding on v7x
            vmem_limit_bytes=vmem_limit,
        ),
    )(y_mm, w1, b1, w2, b2, w3f, b3f, diag_mask)

    # For tiny K/F (out_pad == 128) the post-kernel slices are cheap; keep the
    # packed slab and slice here (per perf review).
    logits = out[:B, :K]                                              # (B, K)
    loc = out[:B, K:K + K * F].reshape(B, K, F)                       # (B, K, F)
    scale_tril = out[:B, scale_off:scale_off + K * F * F].reshape(B, K, F, F)

    # TODO(synk): the Mixture/MultivariateNormal Distribution object itself
    # (log_prob / sampling machinery) is not a tensor op; we return its params.
    return logits, loc, scale_tril


# ------------------------------- params --------------------------------------

def init_gmm_params(key, features, context, components, hidden=64):
    """Deterministic synthetic parameters for the hyper MLP (zuko.nn.MLP
    default is two hidden layers of 64 with ReLU)."""
    K, F = components, features
    T = F * (F - 1) // 2
    out_dim = K + K * F + K * F + K * T
    k1, k2, k3, k4, k5, k6 = jax.random.split(key, 6)
    params = dict(
        w1=jax.random.normal(k1, (context, hidden), jnp.float32) * 0.1,
        b1=jax.random.normal(k4, (1, hidden), jnp.float32) * 0.1,
        w2=jax.random.normal(k2, (hidden, hidden), jnp.float32) * 0.1,
        b2=jax.random.normal(k5, (1, hidden), jnp.float32) * 0.1,
        w3=jax.random.normal(k3, (hidden, out_dim), jnp.float32) * 0.1,
        b3=jax.random.normal(k6, (1, out_dim), jnp.float32) * 0.1,
    )
    return params, out_dim


# ------------------------------- reference ------------------------------------

def _reference(y, params, features, components):
    B = y.shape[0]
    K, F = components, features
    T = F * (F - 1) // 2
    h = jnp.maximum(y @ params["w1"] + params["b1"], 0.0)
    h = jnp.maximum(h @ params["w2"] + params["b2"], 0.0)
    phi = h @ params["w3"] + params["b3"]
    sizes = [K, K * F, K * F, K * T]
    o = np.cumsum([0] + sizes)
    logits = phi[:, o[0]:o[1]]
    loc = phi[:, o[1]:o[2]].reshape(B, K, F)
    diag = phi[:, o[2]:o[3]].reshape(B, K, F)
    tril = phi[:, o[3]:o[4]].reshape(B, K, T)
    scale = jnp.zeros((B, K, F, F), jnp.float32)
    scale = scale.at[..., jnp.arange(F), jnp.arange(F)].set(jnp.exp(diag) + 1e-5)
    rows, cols = np.tril_indices(F, -1)   # row-major, matches masked_scatter
    scale = scale.at[..., rows, cols].set(tril)
    return logits, loc, scale


# --------------------------------- main ---------------------------------------

if __name__ == "__main__":
    features, context, components = 4, 8, 2
    key = jax.random.PRNGKey(0)
    k_param, k_y1, k_y2 = jax.random.split(key, 3)
    params, _ = init_gmm_params(k_param, features, context, components)

    def check(batch, k_y):
        y = jax.random.normal(k_y, (batch, context), jnp.float32)
        logits, loc, scale_tril = jax.block_until_ready(
            gmm_forward(y, params, features, components))
        r_logits, r_loc, r_scale = _reference(y, params, features, components)
        assert logits.shape == (batch, components)
        assert loc.shape == (batch, components, features)
        assert scale_tril.shape == (batch, components, features, features)
        np.testing.assert_allclose(np.asarray(logits), np.asarray(r_logits),
                                   rtol=1e-5, atol=1e-5)
        np.testing.assert_allclose(np.asarray(loc), np.asarray(r_loc),
                                   rtol=1e-5, atol=1e-5)
        np.testing.assert_allclose(np.asarray(scale_tril), np.asarray(r_scale),
                                   rtol=1e-5, atol=1e-5)

    check(4, k_y1)       # tiny batch: single 8-row tile
    check(300, k_y2)     # multi-tile path: 2 tiles of 152 rows (B_pad=304)

    print("KERNEL_OK")
</pallas_src>

<mosaic_0001>
module attributes {stable_mosaic.version = 11 : i64} {
  func.func @_gmm_fused_kernel(%arg0: i32, %arg1: memref<8x8xf32, #tpu.memory_space<vmem>>, %arg2: memref<8x128xf32, #tpu.memory_space<vmem>>, %arg3: memref<1x128xf32, #tpu.memory_space<vmem>>, %arg4: memref<128x128xf32, #tpu.memory_space<vmem>>, %arg5: memref<1x128xf32, #tpu.memory_space<vmem>>, %arg6: memref<128x128xf32, #tpu.memory_space<vmem>>, %arg7: memref<1x128xf32, #tpu.memory_space<vmem>>, %arg8: memref<1x128xf32, #tpu.memory_space<vmem>>, %arg9: memref<8x128xf32, #tpu.memory_space<vmem>>) attributes {dimension_semantics = [#tpu.dimension_semantics<parallel>], iteration_bounds = array<i64: 1>, scalar_prefetch = 0 : i64, scratch_operands = 0 : i64, tpu.core_type = #tpu.core_type<tc>, window_params = [{transform_indices = @transform_0, window_bounds = array<i64: 8, 8>}, {pipeline_mode = #tpu.pipeline_mode<synchronous>, transform_indices = @transform_1, window_bounds = array<i64: 8, 128>}, {pipeline_mode = #tpu.pipeline_mode<synchronous>, transform_indices = @transform_2, window_bounds = array<i64: 1, 128>}, {pipeline_mode = #tpu.pipeline_mode<synchronous>, transform_indices = @transform_3, window_bounds = array<i64: 128, 128>}, {pipeline_mode = #tpu.pipeline_mode<synchronous>, transform_indices = @transform_4, window_bounds = array<i64: 1, 128>}, {pipeline_mode = #tpu.pipeline_mode<synchronous>, transform_indices = @transform_5, window_bounds = array<i64: 128, 128>}, {pipeline_mode = #tpu.pipeline_mode<synchronous>, transform_indices = @transform_6, window_bounds = array<i64: 1, 128>}, {pipeline_mode = #tpu.pipeline_mode<synchronous>, transform_indices = @transform_7, window_bounds = array<i64: 1, 128>}, {transform_indices = @transform_8, window_bounds = array<i64: 8, 128>}]} {
    %c0 = arith.constant 0 : index
    %c0_0 = arith.constant 0 : index
    %0 = vector.load %arg1[%c0, %c0_0] : memref<8x8xf32, #tpu.memory_space<vmem>>, vector<8x8xf32>
    %c0_1 = arith.constant 0 : index
    %c0_2 = arith.constant 0 : index
    %1 = vector.load %arg2[%c0_1, %c0_2] : memref<8x128xf32, #tpu.memory_space<vmem>>, vector<8x128xf32>
    %cst = arith.constant dense<0.000000e+00> : vector<8x128xf32>
    %2 = tpu.matmul %0, %1, %cst {dimension_numbers = #tpu.dot_dimension_numbers<[1], [0], [0], [1], [0, 0, 1, 1], [], []>} : vector<8x8xf32>, vector<8x128xf32>, vector<8x128xf32> -> vector<8x128xf32>
    %c0_3 = arith.constant 0 : index
    %c0_4 = arith.constant 0 : index
    %3 = vector.load %arg3[%c0_3, %c0_4] : memref<1x128xf32, #tpu.memory_space<vmem>>, vector<1x128xf32>
    %4 = vector.broadcast %3 : vector<1x128xf32> to vector<8x128xf32>
    %5 = arith.addf %2, %4 : vector<8x128xf32>
    %cst_5 = arith.constant 0.000000e+00 : f32
    %6 = vector.broadcast %cst_5 : f32 to vector<8x128xf32>
    %7 = arith.maximumf %5, %6 : vector<8x128xf32>
    %c0_6 = arith.constant 0 : index
    %c0_7 = arith.constant 0 : index
    %8 = vector.load %arg4[%c0_6, %c0_7] : memref<128x128xf32, #tpu.memory_space<vmem>>, vector<128x128xf32>
    %cst_8 = arith.constant dense<0.000000e+00> : vector<8x128xf32>
    %9 = tpu.matmul %7, %8, %cst_8 {dimension_numbers = #tpu.dot_dimension_numbers<[1], [0], [0], [1], [0, 0, 1, 1], [], []>} : vector<8x128xf32>, vector<128x128xf32>, vector<8x128xf32> -> vector<8x128xf32>
    %c0_9 = arith.constant 0 : index
    %c0_10 = arith.constant 0 : index
    %10 = vector.load %arg5[%c0_9, %c0_10] : memref<1x128xf32, #tpu.memory_space<vmem>>, vector<1x128xf32>
    %11 = vector.broadcast %10 : vector<1x128xf32> to vector<8x128xf32>
    %12 = arith.addf %9, %11 : vector<8x128xf32>
    %cst_11 = arith.constant 0.000000e+00 : f32
    %13 = vector.broadcast %cst_11 : f32 to vector<8x128xf32>
    %14 = arith.maximumf %12, %13 : vector<8x128xf32>
    %c0_12 = arith.constant 0 : index
    %c0_13 = arith.constant 0 : index
    %15 = vector.load %arg6[%c0_12, %c0_13] : memref<128x128xf32, #tpu.memory_space<vmem>>, vector<128x128xf32>
    %cst_14 = arith.constant dense<0.000000e+00> : vector<8x128xf32>
    %16 = tpu.matmul %14, %15, %cst_14 {dimension_numbers = #tpu.dot_dimension_numbers<[1], [0], [0], [1], [0, 0, 1, 1], [], []>} : vector<8x128xf32>, vector<128x128xf32>, vector<8x128xf32> -> vector<8x128xf32>
    %c0_15 = arith.constant 0 : index
    %c0_16 = arith.constant 0 : index
    %17 = vector.load %arg7[%c0_15, %c0_16] : memref<1x128xf32, #tpu.memory_space<vmem>>, vector<1x128xf32>
    %18 = vector.broadcast %17 : vector<1x128xf32> to vector<8x128xf32>
    %19 = arith.addf %16, %18 : vector<8x128xf32>
    %c0_17 = arith.constant 0 : index
    %c0_18 = arith.constant 0 : index
    %20 = vector.load %arg8[%c0_17, %c0_18] : memref<1x128xf32, #tpu.memory_space<vmem>>, vector<1x128xf32>
    %cst_19 = arith.constant 0.000000e+00 : f32
    %21 = vector.broadcast %cst_19 : f32 to vector<1x128xf32>
    %22 = arith.cmpf one, %20, %21 : vector<1x128xf32>
    %23 = math.exp %19 : vector<8x128xf32>
    %cst_20 = arith.constant 9.99999974E-6 : f32
    %24 = vector.broadcast %cst_20 : f32 to vector<8x128xf32>
    %25 = arith.addf %23, %24 : vector<8x128xf32>
    %26 = vector.shape_cast %22 : vector<1x128xi1> to vector<1x128xi1>
    %27 = vector.broadcast %26 : vector<1x128xi1> to vector<8x128xi1>
    %28 = arith.select %27, %25, %19 : vector<8x128xi1>, vector<8x128xf32>
    %c0_21 = arith.constant 0 : index
    %c0_22 = arith.constant 0 : index
    %29 = vector.load %arg9[%c0_21, %c0_22] : memref<8x128xf32, #tpu.memory_space<vmem>>, vector<8x128xf32>
    tpu.vector_store %arg9[%c0_21, %c0_22], %28 {strides = array<i32>} : memref<8x128xf32, #tpu.memory_space<vmem>>, vector<8x128xf32>,
    return
  }
  func.func @transform_0(%arg0: i32) -> (i32, i32) {
    %c0_i32 = arith.constant 0 : i32
    %c0_i32_0 = arith.constant 0 : i32
    return %arg0, %c0_i32 : i32, i32
  }
  func.func @transform_1(%arg0: i32) -> (i32, i32) {
    %c0_i32 = arith.constant 0 : i32
    %c0_i32_0 = arith.constant 0 : i32
    %c0_i32_1 = arith.constant 0 : i32
    return %c0_i32, %c0_i32_0 : i32, i32
  }
  func.func @transform_2(%arg0: i32) -> (i32, i32) {
    %c0_i32 = arith.constant 0 : i32
    %c0_i32_0 = arith.constant 0 : i32
    %c0_i32_1 = arith.constant 0 : i32
    return %c0_i32, %c0_i32_0 : i32, i32
  }
  func.func @transform_3(%arg0: i32) -> (i32, i32) {
    %c0_i32 = arith.constant 0 : i32
    %c0_i32_0 = arith.constant 0 : i32
    %c0_i32_1 = arith.constant 0 : i32
    return %c0_i32, %c0_i32_0 : i32, i32
  }
  func.func @transform_4(%arg0: i32) -> (i32, i32) {
    %c0_i32 = arith.constant 0 : i32
    %c0_i32_0 = arith.constant 0 : i32
    %c0_i32_1 = arith.constant 0 : i32
    return %c0_i32, %c0_i32_0 : i32, i32
  }
  func.func @transform_5(%arg0: i32) -> (i32, i32) {
    %c0_i32 = arith.constant 0 : i32
    %c0_i32_0 = arith.constant 0 : i32
    %c0_i32_1 = arith.constant 0 : i32
    return %c0_i32, %c0_i32_0 : i32, i32
  }
  func.func @transform_6(%arg0: i32) -> (i32, i32) {
    %c0_i32 = arith.constant 0 : i32
    %c0_i32_0 = arith.constant 0 : i32
    %c0_i32_1 = arith.constant 0 : i32
    return %c0_i32, %c0_i32_0 : i32, i32
  }
  func.func @transform_7(%arg0: i32) -> (i32, i32) {
    %c0_i32 = arith.constant 0 : i32
    %c0_i32_0 = arith.constant 0 : i32
    %c0_i32_1 = arith.constant 0 : i32
    return %c0_i32, %c0_i32_0 : i32, i32
  }
  func.func @transform_8(%arg0: i32) -> (i32, i32) {
    %c0_i32 = arith.constant 0 : i32
    %c0_i32_0 = arith.constant 0 : i32
    return %arg0, %c0_i32 : i32, i32
  }
}

</mosaic_0001>

<llo_original>
// kernel: gmm_forward.1
$region0: #{gmm_forward.1}
  #allocation0 [shape = 'u32[]', space=smem, size = 0x4, offset = 0x4, fixed_abs, tag = 'smem constant byte address 0x4 - core index']
  #allocation1 [shape = 'u32[144,128]{1,0:T(1,128)}', space=vmem, size = 0x12000, scoped, tag = 'internal scratch']
  %s0 = inlined_call_operand.vmem [shape: f32[8,8], index: 0, kind: input, shape index: {}]
  %s1 = inlined_call_operand.vmem [shape: f32[8,128], index: 1, kind: input, shape index: {}]
  %s2 = inlined_call_operand.vmem [shape: f32[1,128], index: 2, kind: input, shape index: {}]
  %s3 = inlined_call_operand.vmem [shape: f32[128,128], index: 3, kind: input, shape index: {}]
  %s4 = inlined_call_operand.vmem [shape: f32[1,128], index: 4, kind: input, shape index: {}]
  %s5 = inlined_call_operand.vmem [shape: f32[128,128], index: 5, kind: input, shape index: {}]
  %s6 = inlined_call_operand.vmem [shape: f32[1,128], index: 6, kind: input, shape index: {}]
  %s7 = inlined_call_operand.vmem [shape: f32[1,128], index: 7, kind: input, shape index: {}]
  %s8 = inlined_call_operand.vmem [shape: f32[8,128], index: 8, kind: output, shape index: {}]
  %s9 = sld [smem:[#allocation0]]
  $region42: #{gmm_forward.1} parent=0
    _
  %s11 = ssub.s32 1, %s9
  %s12 = scalar_select 0, %s11, %s9
  // Predicated region
  $region2: #{gmm_forward.1} parent=0 // pred_check
    _
  $region3: #{gmm_forward.1} parent=0 // pred_check_branch
    %14 = sbr.rel (0) target = $region5
  $region4: #{gmm_forward.1} parent=0 // pred_region
    _
  $region5: #{gmm_forward.1} parent=0 // pred_fallthru
    _
  // Predicated region
  $region6: #{gmm_forward.1} parent=0 // pred_check
    _
  $region7: #{gmm_forward.1} parent=0 // pred_check_branch
    %16 = sbr.rel (0) target = $region9
  $region8: #{gmm_forward.1} parent=0 // pred_region
    _
  $region9: #{gmm_forward.1} parent=0 // pred_fallthru
    _
  // Predicated region
  $region10: #{gmm_forward.1} parent=0 // pred_check
    _
  $region11: #{gmm_forward.1} parent=0 // pred_check_branch
    %18 = sbr.rel (0) target = $region13
  $region12: #{gmm_forward.1} parent=0 // pred_region
    _
  $region13: #{gmm_forward.1} parent=0 // pred_fallthru
    _
  // Predicated region
  $region14: #{gmm_forward.1} parent=0 // pred_check
    _
  $region15: #{gmm_forward.1} parent=0 // pred_check_branch
    %20 = sbr.rel (0) target = $region17
  $region16: #{gmm_forward.1} parent=0 // pred_region
    _
  $region17: #{gmm_forward.1} parent=0 // pred_fallthru
    _
  // Predicated region
  $region18: #{gmm_forward.1} parent=0 // pred_check
    _
  $region19: #{gmm_forward.1} parent=0 // pred_check_branch
    %22 = sbr.rel (0) target = $region21
  $region20: #{gmm_forward.1} parent=0 // pred_region
    _
  $region21: #{gmm_forward.1} parent=0 // pred_fallthru
    _
  // Predicated region
  $region22: #{gmm_forward.1} parent=0 // pred_check
    _
  $region23: #{gmm_forward.1} parent=0 // pred_check_branch
    %24 = sbr.rel (0) target = $region25
  $region24: #{gmm_forward.1} parent=0 // pred_region
    _
  $region25: #{gmm_forward.1} parent=0 // pred_fallthru
    _
  // Predicated region
  $region26: #{gmm_forward.1} parent=0 // pred_check
    _
  $region27: #{gmm_forward.1} parent=0 // pred_check_branch
    %26 = sbr.rel (0) target = $region29
  $region28: #{gmm_forward.1} parent=0 // pred_region
    _
  $region29: #{gmm_forward.1} parent=0 // pred_fallthru
    _
  // Predicated region
  $region30: #{gmm_forward.1} parent=0 // pred_check
    _
  $region31: #{gmm_forward.1} parent=0 // pred_check_branch
    %28 = sbr.rel (0) target = $region33
  $region32: #{gmm_forward.1} parent=0 // pred_region
    _
  $region33: #{gmm_forward.1} parent=0 // pred_fallthru
    _
  %v29 = vld [vmem:[%s0] sm:$0xff]
  %v30 = vld [vmem:[%s1] sm:$0xff]
  %v31 = vld [vmem:[%s2] sm:$0x1]
  %v33 = vlaneseq
  %v34 = vshrl.u32 %v33, 7
  %v35 = vsub.s32 0, %v34
  %v36 = vrot.slane %v31, %v35
  %vm38 = vcmask 64512
  %v40 = vsel %vm38, %v29, 0
  %42 = vmatprep.subr.mxu0 0.0
  %43 = vmatpush1.msra.mxu0 0.0
  %44 = vmatprep.subr.mxu0 0.0
  %45 = vmatpush1.msra.mxu0 0.0
  %46 = vmatprep.subr.mxu0 0.0
  %47 = vmatpush1.msra.mxu0 0.0
  %48 = vmatprep.subr.mxu0 0.0
  %49 = vmatpush1.msra.mxu0 0.0
  %50 = vmatprep.subr.mxu0 0.0
  %51 = vmatpush1.msra.mxu0 0.0
  %52 = vmatprep.subr.mxu0 0.0
  %53 = vmatpush1.msra.mxu0 0.0
  %54 = vmatprep.subr.mxu0 0.0
  %55 = vmatpush1.msra.mxu0 0.0
  %56 = vmatprep.subr.mxu0 0.0
  %57 = vmatpush1.msra.mxu0 0.0
  %58 = vmatprep.subr.mxu0 0.0
  %59 = vmatpush1.msra.mxu0 0.0
  %60 = vmatprep.subr.mxu0 0.0
  %61 = vmatpush1.msra.mxu0 0.0
  %62 = vmatprep.subr.mxu0 0.0
  %63 = vmatpush1.msra.mxu0 0.0
  %64 = vmatprep.subr.mxu0 0.0
  %65 = vmatpush1.msra.mxu0 0.0
  %66 = vmatprep.subr.mxu0 0.0
  %67 = vmatpush1.msra.mxu0 0.0
  %68 = vmatprep.subr.mxu0 0.0
  %69 = vmatpush1.msra.mxu0 0.0
  %70 = vmatprep.subr.mxu0 0.0
  %71 = vmatpush1.msra.mxu0 0.0
  %72 = vmatprep.subr.mxu0 0.0
  %73 = vmatpush1.msra.mxu0 %v30
  %74 = vmatprep.subr.mxu0 0.0
  %75 = vmatpush2.msra.mxu0 0.0
  %76 = vmatprep.subr.mxu0 0.0
  %77 = vmatpush2.msra.mxu0 0.0
  %78 = vmatprep.subr.mxu0 0.0
  %79 = vmatpush2.msra.mxu0 0.0
  %80 = vmatprep.subr.mxu0 0.0
  %81 = vmatpush2.msra.mxu0 0.0
  %82 = vmatprep.subr.mxu0 0.0
  %83 = vmatpush2.msra.mxu0 0.0
  %84 = vmatprep.subr.mxu0 0.0
  %85 = vmatpush2.msra.mxu0 0.0
  %86 = vmatprep.subr.mxu0 0.0
  %87 = vmatpush2.msra.mxu0 0.0
  %88 = vmatprep.subr.mxu0 0.0
  %89 = vmatpush2.msra.mxu0 0.0
  %90 = vmatprep.subr.mxu0 0.0
  %91 = vmatpush2.msra.mxu0 0.0
  %92 = vmatprep.subr.mxu0 0.0
  %93 = vmatpush2.msra.mxu0 0.0
  %94 = vmatprep.subr.mxu0 0.0
  %95 = vmatpush2.msra.mxu0 0.0
  %96 = vmatprep.subr.mxu0 0.0
  %97 = vmatpush2.msra.mxu0 0.0
  %98 = vmatprep.subr.mxu0 0.0
  %99 = vmatpush2.msra.mxu0 0.0
  %100 = vmatprep.subr.mxu0 0.0
  %101 = vmatpush2.msra.mxu0 0.0
  %102 = vmatprep.subr.mxu0 0.0
  %103 = vmatpush2.msra.mxu0 0.0
  %104 = vmatprep.subr.mxu0 0.0
  %105 = vmatpush2.msra.mxu0 0.0
  %106 = vmatprep.mubr.f32.mxu0 0.0
  %107 = vmatmul.mubr.f32.gmra.mxu0 %v40
  %v108 = vpop.f32.mrf.mxu0
  %v109 = vadd.f32 %v36, %v108
  %v110 = vpop.f32.mrf.mxu0
  %111 = vdwg.mxu0
  %v112 = vmax.f32 %v109, 0.0
  %v113 = vld [vmem:[%s3] sm:$0xff]
  %v114 = vld [vmem:[%s3 + $0x8] sm:$0xff]
  %v115 = vld [vmem:[%s3 + $0x10] sm:$0xff]
  %v116 = vld [vmem:[%s3 + $0x18] sm:$0xff]
  %v117 = vld [vmem:[%s3 + $0x20] sm:$0xff]
  %v118 = vld [vmem:[%s3 + $0x28] sm:$0xff]
  %v119 = vld [vmem:[%s3 + $0x30] sm:$0xff]
  %v120 = vld [vmem:[%s3 + $0x38] sm:$0xff]
  %v121 = vld [vmem:[%s3 + $0x40] sm:$0xff]
  %v122 = vld [vmem:[%s3 + $0x48] sm:$0xff]
  %v123 = vld [vmem:[%s3 + $0x50] sm:$0xff]
  %v124 = vld [vmem:[%s3 + $0x58] sm:$0xff]
  %v125 = vld [vmem:[%s3 + $0x60] sm:$0xff]
  %v126 = vld [vmem:[%s3 + $0x68] sm:$0xff]
  %v127 = vld [vmem:[%s3 + $0x70] sm:$0xff]
  %v128 = vld [vmem:[%s3 + $0x78] sm:$0xff]
  %v129 = vld [vmem:[%s4] sm:$0x1]
  %v131 = vlaneseq
  %v132 = vshrl.u32 %v131, 7
  %v133 = vsub.s32 0, %v132
  %v134 = vrot.slane %v129, %v133
  %136 = vmatprep.subr.mxu0 0.0
  %137 = vmatpush1.msra.mxu0 %v128
  %138 = vmatprep.subr.mxu0 0.0
  %139 = vmatpush1.msra.mxu0 %v127
  %140 = vmatprep.subr.mxu0 0.0
  %141 = vmatpush1.msra.mxu0 %v126
  %142 = vmatprep.subr.mxu0 0.0
  %143 = vmatpush1.msra.mxu0 %v125
  %144 = vmatprep.subr.mxu0 0.0
  %145 = vmatpush1.msra.mxu0 %v124
  %146 = vmatprep.subr.mxu0 0.0
  %147 = vmatpush1.msra.mxu0 %v123
  %148 = vmatprep.subr.mxu0 0.0
  %149 = vmatpush1.msra.mxu0 %v122
  %150 = vmatprep.subr.mxu0 0.0
  %151 = vmatpush1.msra.mxu0 %v121
  %152 = vmatprep.subr.mxu0 0.0
  %153 = vmatpush1.msra.mxu0 %v120
  %154 = vmatprep.subr.mxu0 0.0
  %155 = vmatpush1.msra.mxu0 %v119
  %156 = vmatprep.subr.mxu0 0.0
  %157 = vmatpush1.msra.mxu0 %v118
  %158 = vmatprep.subr.mxu0 0.0
  %159 = vmatpush1.msra.mxu0 %v117
  %160 = vmatprep.subr.mxu0 0.0
  %161 = vmatpush1.msra.mxu0 %v116
  %162 = vmatprep.subr.mxu0 0.0
  %163 = vmatpush1.msra.mxu0 %v115
  %164 = vmatprep.subr.mxu0 0.0
  %165 = vmatpush1.msra.mxu0 %v114
  %166 = vmatprep.subr.mxu0 0.0
  %167 = vmatpush1.msra.mxu0 %v113
  %168 = vmatprep.subr.mxu0 0.0
  %169 = vmatpush2.msra.mxu0 0.0
  %170 = vmatprep.subr.mxu0 0.0
  %171 = vmatpush2.msra.mxu0 0.0
  %172 = vmatprep.subr.mxu0 0.0
  %173 = vmatpush2.msra.mxu0 0.0
  %174 = vmatprep.subr.mxu0 0.0
  %175 = vmatpush2.msra.mxu0 0.0
  %176 = vmatprep.subr.mxu0 0.0
  %177 = vmatpush2.msra.mxu0 0.0
  %178 = vmatprep.subr.mxu0 0.0
  %179 = vmatpush2.msra.mxu0 0.0
  %180 = vmatprep.subr.mxu0 0.0
  %181 = vmatpush2.msra.mxu0 0.0
  %182 = vmatprep.subr.mxu0 0.0
  %183 = vmatpush2.msra.mxu0 0.0
  %184 = vmatprep.subr.mxu0 0.0
  %185 = vmatpush2.msra.mxu0 0.0
  %186 = vmatprep.subr.mxu0 0.0
  %187 = vmatpush2.msra.mxu0 0.0
  %188 = vmatprep.subr.mxu0 0.0
  %189 = vmatpush2.msra.mxu0 0.0
  %190 = vmatprep.subr.mxu0 0.0
  %191 = vmatpush2.msra.mxu0 0.0
  %192 = vmatprep.subr.mxu0 0.0
  %193 = vmatpush2.msra.mxu0 0.0
  %194 = vmatprep.subr.mxu0 0.0
  %195 = vmatpush2.msra.mxu0 0.0
  %196 = vmatprep.subr.mxu0 0.0
  %197 = vmatpush2.msra.mxu0 0.0
  %198 = vmatprep.subr.mxu0 0.0
  %199 = vmatpush2.msra.mxu0 0.0
  %200 = vmatprep.mubr.f32.mxu0 0.0
  %201 = vmatmul.mubr.f32.gmra.mxu0 %v112
  %v202 = vpop.f32.mrf.mxu0
  %v203 = vadd.f32 %v134, %v202
  %v204 = vpop.f32.mrf.mxu0
  %205 = vdwg.mxu0
  %v206 = vmax.f32 %v203, 0.0
  %v207 = vld [vmem:[%s5] sm:$0xff]
  %v208 = vld [vmem:[%s5 + $0x8] sm:$0xff]
  %v209 = vld [vmem:[%s5 + $0x10] sm:$0xff]
  %v210 = vld [vmem:[%s5 + $0x18] sm:$0xff]
  %v211 = vld [vmem:[%s5 + $0x20] sm:$0xff]
  %v212 = vld [vmem:[%s5 + $0x28] sm:$0xff]
  %v213 = vld [vmem:[%s5 + $0x30] sm:$0xff]
  %v214 = vld [vmem:[%s5 + $0x38] sm:$0xff]
  %v215 = vld [vmem:[%s5 + $0x40] sm:$0xff]
  %v216 = vld [vmem:[%s5 + $0x48] sm:$0xff]
  %v217 = vld [vmem:[%s5 + $0x50] sm:$0xff]
  %v218 = vld [vmem:[%s5 + $0x58] sm:$0xff]
  %v219 = vld [vmem:[%s5 + $0x60] sm:$0xff]
  %v220 = vld [vmem:[%s5 + $0x68] sm:$0xff]
  %v221 = vld [vmem:[%s5 + $0x70] sm:$0xff]
  %v222 = vld [vmem:[%s5 + $0x78] sm:$0xff]
  %v223 = vld [vmem:[%s6] sm:$0x1]
  %v225 = vlaneseq
  %v226 = vshrl.u32 %v225, 7
  %v227 = vsub.s32 0, %v226
  %v228 = vrot.slane %v223, %v227
  %230 = vmatprep.subr.mxu0 0.0
  %231 = vmatpush1.msra.mxu0 %v222
  %232 = vmatprep.subr.mxu0 0.0
  %233 = vmatpush1.msra.mxu0 %v221
  %234 = vmatprep.subr.mxu0 0.0
  %235 = vmatpush1.msra.mxu0 %v220
  %236 = vmatprep.subr.mxu0 0.0
  %237 = vmatpush1.msra.mxu0 %v219
  %238 = vmatprep.subr.mxu0 0.0
  %239 = vmatpush1.msra.mxu0 %v218
  %240 = vmatprep.subr.mxu0 0.0
  %241 = vmatpush1.msra.mxu0 %v217
  %242 = vmatprep.subr.mxu0 0.0
  %243 = vmatpush1.msra.mxu0 %v216
  %244 = vmatprep.subr.mxu0 0.0
  %245 = vmatpush1.msra.mxu0 %v215
  %246 = vmatprep.subr.mxu0 0.0
  %247 = vmatpush1.msra.mxu0 %v214
  %248 = vmatprep.subr.mxu0 0.0
  %249 = vmatpush1.msra.mxu0 %v213
  %250 = vmatprep.subr.mxu0 0.0
  %251 = vmatpush1.msra.mxu0 %v212
  %252 = vmatprep.subr.mxu0 0.0
  %253 = vmatpush1.msra.mxu0 %v211
  %254 = vmatprep.subr.mxu0 0.0
  %255 = vmatpush1.msra.mxu0 %v210
  %256 = vmatprep.subr.mxu0 0.0
  %257 = vmatpush1.msra.mxu0 %v209
  %258 = vmatprep.subr.mxu0 0.0
  %259 = vmatpush1.msra.mxu0 %v208
  %260 = vmatprep.subr.mxu0 0.0
  %261 = vmatpush1.msra.mxu0 %v207
  %262 = vmatprep.subr.mxu0 0.0
  %263 = vmatpush2.msra.mxu0 0.0
  %264 = vmatprep.subr.mxu0 0.0
  %265 = vmatpush2.msra.mxu0 0.0
  %266 = vmatprep.subr.mxu0 0.0
  %267 = vmatpush2.msra.mxu0 0.0
  %268 = vmatprep.subr.mxu0 0.0
  %269 = vmatpush2.msra.mxu0 0.0
  %270 = vmatprep.subr.mxu0 0.0
  %271 = vmatpush2.msra.mxu0 0.0
  %272 = vmatprep.subr.mxu0 0.0
  %273 = vmatpush2.msra.mxu0 0.0
  %274 = vmatprep.subr.mxu0 0.0
  %275 = vmatpush2.msra.mxu0 0.0
  %276 = vmatprep.subr.mxu0 0.0
  %277 = vmatpush2.msra.mxu0 0.0
  %278 = vmatprep.subr.mxu0 0.0
  %279 = vmatpush2.msra.mxu0 0.0
  %280 = vmatprep.subr.mxu0 0.0
  %281 = vmatpush2.msra.mxu0 0.0
  %282 = vmatprep.subr.mxu0 0.0
  %283 = vmatpush2.msra.mxu0 0.0
  %284 = vmatprep.subr.mxu0 0.0
  %285 = vmatpush2.msra.mxu0 0.0
  %286 = vmatprep.subr.mxu0 0.0
  %287 = vmatpush2.msra.mxu0 0.0
  %288 = vmatprep.subr.mxu0 0.0
  %289 = vmatpush2.msra.mxu0 0.0
  %290 = vmatprep.subr.mxu0 0.0
  %291 = vmatpush2.msra.mxu0 0.0
  %292 = vmatprep.subr.mxu0 0.0
  %293 = vmatpush2.msra.mxu0 0.0
  %294 = vmatprep.mubr.f32.mxu0 0.0
  %295 = vmatmul.mubr.f32.gmra.mxu0 %v206
  %v296 = vpop.f32.mrf.mxu0
  %v297 = vadd.f32 %v228, %v296
  %v298 = vpop.f32.mrf.mxu0
  %299 = vdwg.mxu0
  %v300 = vld [vmem:[%s7] sm:$0x1]
  %vm301 = vcmp.ne.f32.partialorder %v300, 0.0
  %v302 = vmul.f32 %v297, 1.442695
  %v303 = vpow.pop %v302
  %v304 = vadd.f32 %v303, 1e-05
  %v305 = vsel %vm301, 1, 0
  %v306 = vlaneseq
  %v307 = vshrl.u32 %v306, 7
  %v308 = vsub.s32 0, %v307
  %v309 = vrot.slane %v305, %v308
  %vm310 = vcmp.eq.s32.totalorder %v309, 1
  %v311 = vsel %vm310, %v304, %v297
  %312 = vst [vmem:[%s8] sm:$0xff] %v311
  // Predicated region
  $region34: #{gmm_forward.1} parent=0 // pred_check
    _
  $region35: #{gmm_forward.1} parent=0 // pred_check_branch
    %314 = sbr.rel (0) target = $region37
  $region36: #{gmm_forward.1} parent=0 // pred_region
    _
  $region37: #{gmm_forward.1} parent=0 // pred_fallthru
    _
  // Predicated region
  $region38: #{gmm_forward.1} parent=0 // pred_check
    _
  $region39: #{gmm_forward.1} parent=0 // pred_check_branch
    %316 = sbr.rel (0) target = $region41
  $region40: #{gmm_forward.1} parent=0 // pred_region
    _
  $region41: #{gmm_forward.1} parent=0 // pred_fallthru
    _

</llo_original>
